<compile_context>
chip_gen: v7x
topology: tpu7x:2x2x1
jax: 0.10.0
libtpu: 0.0.40
codegen_flags: <defaults>
</compile_context>

<pallas_src>
import jax
import jax.numpy as jnp
from jax.experimental import pallas as pl
from jax.experimental.pallas import tpu as pltpu


def _sigmoid(x):
    # Exact sigmoid via a single EUP tanh: 1/(1+exp(-x)) == 0.5*(tanh(x/2)+1).
    return 0.5 * (jnp.tanh(0.5 * x) + 1.0)


def discriminator_kernel(
    fea_ref,   # (TB, F)  f32   flattened feature tile (cast to bf16 in-kernel)
    attr_ref,  # (TB, A)  f32   attribute tile
    wf_ref,    # (F, U)   bf16  folded weight: w1 @ w3[:U]
    wa_ref,    # (A, U)   bf16  folded weight: w2 @ w3[U:]
    b_ref,     # (1, U)   f32   folded bias:   b1@w3[:U] + b2@w3[U:] + b3
    w4_ref,    # (1, U)   f32   model[2] weight as a row
    b4_ref,    # (1, 1)   f32
    out_ref,   # (TB, 1)  f32
):
    # Feature path: cast to bf16 on the VPU right before the MXU dot.
    fea = fea_ref[...].astype(jnp.bfloat16)
    z = jnp.dot(fea, wf_ref[...], preferred_element_type=jnp.float32)

    # Attribute path: SiLU (f32 on VPU/EUP), then tiny-K bf16 matmul.
    attr = attr_ref[...].astype(jnp.float32)
    attr_silu = (attr * _sigmoid(attr)).astype(jnp.bfloat16)
    z = z + jnp.dot(attr_silu, wa_ref[...], preferred_element_type=jnp.float32)
    z = z + b_ref[...]

    # LeakyReLU (PyTorch default negative_slope = 0.01).
    h = jnp.maximum(z, 0.01 * z)

    # model[2]: Linear(U, 1) as a lane reduction + exact sigmoid.
    o = jnp.sum(h * w4_ref[...], axis=-1, keepdims=True) + b4_ref[...]
    out_ref[...] = _sigmoid(o)


def _round_up(x, m):
    return ((x + m - 1) // m) * m


def discriminator_forward(feature, attribute, folded, *, max_tb=512):
    """feature: (B, fea_len, fea_dim); attribute: (B, attr_dim) -> (B,)"""
    B = feature.shape[0]
    A = attribute.shape[1]
    F, U = folded["wf"].shape

    fea2d = feature.reshape(B, -1).astype(jnp.float32)  # nn.Flatten(start_dim=1)
    attr = attribute.astype(jnp.float32)

    # Adaptive batch tile: one grid step for small B (minimal 8-row padding);
    # ~max_tb-row tiles (>= 2 grid steps -> v7x megacore split) for large B.
    if B <= max_tb:
        tb = _round_up(B, 8)
    else:
        nt = pl.cdiv(B, max_tb)
        tb = _round_up(pl.cdiv(B, nt), 8)
    num_tiles = pl.cdiv(B, tb)
    Bp = num_tiles * tb
    if Bp != B:
        fea2d = jnp.pad(fea2d, ((0, Bp - B), (0, 0)))
        attr = jnp.pad(attr, ((0, Bp - B), (0, 0)))

    def whole(shape):  # weight stays resident; same block every grid step
        return pl.BlockSpec(shape, lambda i: (0, 0))

    out = pl.pallas_call(
        discriminator_kernel,
        out_shape=jax.ShapeDtypeStruct((Bp, 1), jnp.float32),
        grid_spec=pltpu.PrefetchScalarGridSpec(
            num_scalar_prefetch=0,
            grid=(num_tiles,),
            in_specs=[
                pl.BlockSpec((tb, F), lambda i: (i, 0)),  # fea tile (f32)
                pl.BlockSpec((tb, A), lambda i: (i, 0)),  # attr tile (f32)
                whole((F, U)),   # Wf (bf16)
                whole((A, U)),   # Wa (bf16)
                whole((1, U)),   # folded bias
                whole((1, U)),   # w4 row
                whole((1, 1)),   # b4
            ],
            out_specs=pl.BlockSpec((tb, 1), lambda i: (i, 0)),
        ),
        compiler_params=pltpu.CompilerParams(
            dimension_semantics=("parallel",),     # megacore batch split
            vmem_limit_bytes=32 * 1024 * 1024,     # safe on v5e/v6e/v7x
        ),
    )(
        fea2d, attr,
        folded["wf"], folded["wa"], folded["b"],
        folded["w4"], folded["b4"],
    )
    return jnp.squeeze(out, axis=1)[:B]


def init_params(key, attr_dim, fea_len, fea_dim, num_units):
    """Raw PyTorch-style params, U(-1/sqrt(fan_in), +1/sqrt(fan_in))."""
    F = fea_len * fea_dim
    U = num_units
    ks = jax.random.split(key, 8)

    def lin(kw, kb, fan_in, fan_out):
        bound = 1.0 / jnp.sqrt(fan_in)
        w = jax.random.uniform(kw, (fan_in, fan_out), jnp.float32, -bound, bound)
        b = jax.random.uniform(kb, (1, fan_out), jnp.float32, -bound, bound)
        return w, b

    w1, b1 = lin(ks[0], ks[1], F, U)          # flatten Linear
    w2, b2 = lin(ks[2], ks[3], attr_dim, U)   # label_emb Linear
    w3, b3 = lin(ks[4], ks[5], 2 * U, U)      # model[0] Linear
    w4, b4 = lin(ks[6], ks[7], U, 1)          # model[2] Linear
    return {"w1": w1, "b1": b1, "w2": w2, "b2": b2,
            "w3": w3, "b3": b3, "w4": w4, "b4": b4}


def fold_params(params):
    """Fold Linear(F,U)/Linear(A,U) into model[0] Linear(2U,U); done once."""
    U = params["w3"].shape[1]
    w3a = params["w3"][:U, :]   # acts on fea_fla
    w3b = params["w3"][U:, :]   # acts on attr_emb
    wf = params["w1"] @ w3a                                   # (F, U)
    wa = params["w2"] @ w3b                                   # (A, U)
    b = params["b1"] @ w3a + params["b2"] @ w3b + params["b3"]  # (1, U)
    return {
        "wf": wf.astype(jnp.bfloat16),
        "wa": wa.astype(jnp.bfloat16),
        "b": b.astype(jnp.float32),
        "w4": params["w4"].reshape(1, -1).astype(jnp.float32),
        "b4": params["b4"].reshape(1, 1).astype(jnp.float32),
    }


def reference_forward(feature, attribute, params):
    """Pure-JAX f32 reference of the ORIGINAL (unfolded) module."""
    B = feature.shape[0]
    fea = feature.reshape(B, -1).astype(jnp.float32)
    attr = attribute.astype(jnp.float32)
    fea_fla = fea @ params["w1"] + params["b1"]
    attr_emb = (attr * jax.nn.sigmoid(attr)) @ params["w2"] + params["b2"]
    cat = jnp.concatenate([fea_fla, attr_emb], axis=-1)
    h = cat @ params["w3"] + params["b3"]
    h = jnp.where(h > 0, h, 0.01 * h)
    o = h @ params["w4"] + params["b4"]
    return jnp.squeeze(jax.nn.sigmoid(o), axis=1)


if __name__ == "__main__":
    # Small shapes consistent with the module's forward; num_units=256 is the
    # module default (full 128-lane tiles).
    batch, attr_dim, fea_len, fea_dim, num_units = 200, 8, 8, 16, 256

    key = jax.random.PRNGKey(0)
    k_fea, k_attr, k_par = jax.random.split(key, 3)

    feature = jax.random.normal(k_fea, (batch, fea_len, fea_dim), jnp.float32)
    attribute = jax.random.normal(k_attr, (batch, attr_dim), jnp.float32)
    params = init_params(k_par, attr_dim, fea_len, fea_dim, num_units)
    folded = fold_params(params)

    out = discriminator_forward(feature, attribute, folded)
    out = jax.block_until_ready(out)

    ref = reference_forward(feature, attribute, params)
    assert out.shape == (batch,)
    max_err = float(jnp.max(jnp.abs(out - ref)))
    # bf16 MXU operands (incl. folded weights) => loose-but-safe tolerance.
    assert jnp.allclose(out, ref, atol=2e-2, rtol=2e-2), f"max_err={max_err}"

    print("KERNEL_OK")
</pallas_src>

<mosaic_0001>
module attributes {stable_mosaic.version = 11 : i64} {
  func.func @discriminator_kernel(%arg0: i32, %arg1: memref<200x128xf32, #tpu.memory_space<vmem>>, %arg2: memref<200x8xf32, #tpu.memory_space<vmem>>, %arg3: memref<128x256xbf16, #tpu.memory_space<vmem>>, %arg4: memref<8x256xbf16, #tpu.memory_space<vmem>>, %arg5: memref<1x256xf32, #tpu.memory_space<vmem>>, %arg6: memref<1x256xf32, #tpu.memory_space<vmem>>, %arg7: memref<1x1xf32, #tpu.memory_space<vmem>>, %arg8: memref<200x1xf32, #tpu.memory_space<vmem>>) attributes {dimension_semantics = [#tpu.dimension_semantics<parallel>], iteration_bounds = array<i64: 1>, scalar_prefetch = 0 : i64, scratch_operands = 0 : i64, tpu.core_type = #tpu.core_type<tc>, window_params = [{transform_indices = @transform_0, window_bounds = array<i64: 200, 128>}, {transform_indices = @transform_1, window_bounds = array<i64: 200, 8>}, {pipeline_mode = #tpu.pipeline_mode<synchronous>, transform_indices = @transform_2, window_bounds = array<i64: 128, 256>}, {pipeline_mode = #tpu.pipeline_mode<synchronous>, transform_indices = @transform_3, window_bounds = array<i64: 8, 256>}, {pipeline_mode = #tpu.pipeline_mode<synchronous>, transform_indices = @transform_4, window_bounds = array<i64: 1, 256>}, {pipeline_mode = #tpu.pipeline_mode<synchronous>, transform_indices = @transform_5, window_bounds = array<i64: 1, 256>}, {pipeline_mode = #tpu.pipeline_mode<synchronous>, transform_indices = @transform_6, window_bounds = array<i64: 1, 1>}, {transform_indices = @transform_7, window_bounds = array<i64: 200, 1>}]} {
    %c0 = arith.constant 0 : index
    %c0_0 = arith.constant 0 : index
    %0 = vector.load %arg1[%c0, %c0_0] : memref<200x128xf32, #tpu.memory_space<vmem>>, vector<200x128xf32>
    %1 = arith.truncf %0 : vector<200x128xf32> to vector<200x128xbf16>
    %c0_1 = arith.constant 0 : index
    %c0_2 = arith.constant 0 : index
    %2 = vector.load %arg3[%c0_1, %c0_2] : memref<128x256xbf16, #tpu.memory_space<vmem>>, vector<128x256xbf16>
    %cst = arith.constant dense<0.000000e+00> : vector<200x256xf32>
    %3 = tpu.matmul %1, %2, %cst {dimension_numbers = #tpu.dot_dimension_numbers<[1], [0], [0], [1], [0, 0, 1, 1], [], []>} : vector<200x128xbf16>, vector<128x256xbf16>, vector<200x256xf32> -> vector<200x256xf32>
    %c0_3 = arith.constant 0 : index
    %c0_4 = arith.constant 0 : index
    %4 = vector.load %arg2[%c0_3, %c0_4] : memref<200x8xf32, #tpu.memory_space<vmem>>, vector<200x8xf32>
    %cst_5 = arith.constant 5.000000e-01 : f32
    %5 = vector.broadcast %cst_5 : f32 to vector<200x8xf32>
    %6 = arith.mulf %5, %4 : vector<200x8xf32>
    %7 = math.tanh %6 : vector<200x8xf32>
    %cst_6 = arith.constant 1.000000e+00 : f32
    %8 = vector.broadcast %cst_6 : f32 to vector<200x8xf32>
    %9 = arith.addf %7, %8 : vector<200x8xf32>
    %cst_7 = arith.constant 5.000000e-01 : f32
    %10 = vector.broadcast %cst_7 : f32 to vector<200x8xf32>
    %11 = arith.mulf %10, %9 : vector<200x8xf32>
    %12 = arith.mulf %4, %11 : vector<200x8xf32>
    %13 = arith.truncf %12 : vector<200x8xf32> to vector<200x8xbf16>
    %c0_8 = arith.constant 0 : index
    %c0_9 = arith.constant 0 : index
    %14 = vector.load %arg4[%c0_8, %c0_9] : memref<8x256xbf16, #tpu.memory_space<vmem>>, vector<8x256xbf16>
    %cst_10 = arith.constant dense<0.000000e+00> : vector<200x256xf32>
    %15 = tpu.matmul %13, %14, %cst_10 {dimension_numbers = #tpu.dot_dimension_numbers<[1], [0], [0], [1], [0, 0, 1, 1], [], []>} : vector<200x8xbf16>, vector<8x256xbf16>, vector<200x256xf32> -> vector<200x256xf32>
    %16 = arith.addf %3, %15 : vector<200x256xf32>
    %c0_11 = arith.constant 0 : index
    %c0_12 = arith.constant 0 : index
    %17 = vector.load %arg5[%c0_11, %c0_12] : memref<1x256xf32, #tpu.memory_space<vmem>>, vector<1x256xf32>
    %18 = vector.broadcast %17 : vector<1x256xf32> to vector<200x256xf32>
    %19 = arith.addf %16, %18 : vector<200x256xf32>
    %cst_13 = arith.constant 0.00999999977 : f32
    %20 = vector.broadcast %cst_13 : f32 to vector<200x256xf32>
    %21 = arith.mulf %20, %19 : vector<200x256xf32>
    %22 = arith.maximumf %19, %21 : vector<200x256xf32>
    %c0_14 = arith.constant 0 : index
    %c0_15 = arith.constant 0 : index
    %23 = vector.load %arg6[%c0_14, %c0_15] : memref<1x256xf32, #tpu.memory_space<vmem>>, vector<1x256xf32>
    %24 = vector.broadcast %23 : vector<1x256xf32> to vector<200x256xf32>
    %25 = arith.mulf %22, %24 : vector<200x256xf32>
    %cst_16 = arith.constant dense<0.000000e+00> : vector<200xf32>
    %26 = vector.multi_reduction <add>, %25, %cst_16 [1] : vector<200x256xf32> to vector<200xf32>
    %27 = vector.shape_cast %26 : vector<200xf32> to vector<200x1xf32>
    %c0_17 = arith.constant 0 : index
    %c0_18 = arith.constant 0 : index
    %28 = vector.load %arg7[%c0_17, %c0_18] : memref<1x1xf32, #tpu.memory_space<vmem>>, vector<1x1xf32>
    %29 = vector.broadcast %28 : vector<1x1xf32> to vector<200x1xf32>
    %30 = arith.addf %27, %29 : vector<200x1xf32>
    %cst_19 = arith.constant 5.000000e-01 : f32
    %31 = vector.broadcast %cst_19 : f32 to vector<200x1xf32>
    %32 = arith.mulf %31, %30 : vector<200x1xf32>
    %33 = math.tanh %32 : vector<200x1xf32>
    %cst_20 = arith.constant 1.000000e+00 : f32
    %34 = vector.broadcast %cst_20 : f32 to vector<200x1xf32>
    %35 = arith.addf %33, %34 : vector<200x1xf32>
    %cst_21 = arith.constant 5.000000e-01 : f32
    %36 = vector.broadcast %cst_21 : f32 to vector<200x1xf32>
    %37 = arith.mulf %36, %35 : vector<200x1xf32>
    %c0_22 = arith.constant 0 : index
    %c0_23 = arith.constant 0 : index
    %38 = vector.load %arg8[%c0_22, %c0_23] : memref<200x1xf32, #tpu.memory_space<vmem>>, vector<200x1xf32>
    tpu.vector_store %arg8[%c0_22, %c0_23], %37 {strides = array<i32>} : memref<200x1xf32, #tpu.memory_space<vmem>>, vector<200x1xf32>,
    return
  }
  func.func @transform_0(%arg0: i32) -> (i32, i32) {
    %c0_i32 = arith.constant 0 : i32
    %c0_i32_0 = arith.constant 0 : i32
    return %arg0, %c0_i32 : i32, i32
  }
  func.func @transform_1(%arg0: i32) -> (i32, i32) {
    %c0_i32 = arith.constant 0 : i32
    %c0_i32_0 = arith.constant 0 : i32
    return %arg0, %c0_i32 : i32, i32
  }
  func.func @transform_2(%arg0: i32) -> (i32, i32) {
    %c0_i32 = arith.constant 0 : i32
    %c0_i32_0 = arith.constant 0 : i32
    %c0_i32_1 = arith.constant 0 : i32
    return %c0_i32, %c0_i32_0 : i32, i32
  }
  func.func @transform_3(%arg0: i32) -> (i32, i32) {
    %c0_i32 = arith.constant 0 : i32
    %c0_i32_0 = arith.constant 0 : i32
    %c0_i32_1 = arith.constant 0 : i32
    return %c0_i32, %c0_i32_0 : i32, i32
  }
  func.func @transform_4(%arg0: i32) -> (i32, i32) {
    %c0_i32 = arith.constant 0 : i32
    %c0_i32_0 = arith.constant 0 : i32
    %c0_i32_1 = arith.constant 0 : i32
    return %c0_i32, %c0_i32_0 : i32, i32
  }
  func.func @transform_5(%arg0: i32) -> (i32, i32) {
    %c0_i32 = arith.constant 0 : i32
    %c0_i32_0 = arith.constant 0 : i32
    %c0_i32_1 = arith.constant 0 : i32
    return %c0_i32, %c0_i32_0 : i32, i32
  }
  func.func @transform_6(%arg0: i32) -> (i32, i32) {
    %c0_i32 = arith.constant 0 : i32
    %c0_i32_0 = arith.constant 0 : i32
    %c0_i32_1 = arith.constant 0 : i32
    return %c0_i32, %c0_i32_0 : i32, i32
  }
  func.func @transform_7(%arg0: i32) -> (i32, i32) {
    %c0_i32 = arith.constant 0 : i32
    %c0_i32_0 = arith.constant 0 : i32
    return %arg0, %c0_i32 : i32, i32
  }
}

</mosaic_0001>

<llo_original>
// kernel: tpu_custom_call.1
$region0: #{tpu_custom_call.1}
  #allocation0 [shape = 'u32[]', space=smem, size = 0x4, offset = 0x4, fixed_abs, tag = 'smem constant byte address 0x4 - core index']
  #allocation1 [shape = 'u32[144,128]{1,0:T(1,128)}', space=vmem, size = 0x12000, scoped, tag = 'internal scratch']
  #allocation2 [shape = 'f32[1,1]{1,0:T(1,128)S(1)}', space=vmem, size = 0x200, scoped, tag = 'scoped memory for tpu_custom_call.1']
  %s0 = inlined_call_operand.vmem [shape: f32[200,128], index: 0, kind: input, shape index: {}]
  %s1 = inlined_call_operand.vmem [shape: f32[200,8], index: 1, kind: input, shape index: {}]
  %s2 = inlined_call_operand.hbm [shape: bf16[128,256], index: 2, kind: input, shape index: {}]
  %s3 = inlined_call_operand.vmem [shape: bf16[8,256], index: 3, kind: input, shape index: {}]
  %s4 = inlined_call_operand.vmem [shape: f32[1,256], index: 4, kind: input, shape index: {}]
  %s5 = inlined_call_operand.vmem [shape: f32[1,256], index: 5, kind: input, shape index: {}]
  %s6 = inlined_call_operand.<no memory space> [shape: f32[1,1], index: 6, kind: input, shape index: {}]
  %s7 = inlined_call_operand.vmem [shape: f32[200,1], index: 7, kind: output, shape index: {}]
  %s8 = sld [smem:[#allocation0]]
  $region42: #{tpu_custom_call.1} parent=0
    _
  %s10 = ssub.s32 1, %s8
  %s11 = scalar_select 0, %s10, %s8
  %v12 = vstv %s6
  %13 = vst [vmem:[#allocation2] sm:$0x1] %v12
  $region1: #{tpu_custom_call.1} parent=0
    #allocation3 [shape = 'u8[65536]{0}', space=vmem, size = 0x10000, scoped, tag = 'input window, operand 2, single buffered']
    #allocation4 [shape = 's32[1]{0}', space=sflag, size = 0x4, scoped, tag = 'scoped memory for tpu_custom_call.1']
    %14 = vsyncpa [#allocation4], 0
    // Predicated region
    $region2: #{tpu_custom_call.1} parent=1 // pred_check
      _
    $region3: #{tpu_custom_call.1} parent=1 // pred_check_branch
      %16 = sbr.rel (0) target = $region5
    $region4: #{tpu_custom_call.1} parent=1 // pred_region
      _
    $region5: #{tpu_custom_call.1} parent=1 // pred_fallthru
      _
    // Predicated region
    $region6: #{tpu_custom_call.1} parent=1 // pred_check
      _
    $region7: #{tpu_custom_call.1} parent=1 // pred_check_branch
      %18 = sbr.rel (0) target = $region9
    $region8: #{tpu_custom_call.1} parent=1 // pred_region
      _
    $region9: #{tpu_custom_call.1} parent=1 // pred_fallthru
      _
    // Predicated region
    $region10: #{tpu_custom_call.1} parent=1 // pred_check
      _
    $region11: #{tpu_custom_call.1} parent=1 // pred_check_branch
      %20 = sbr.rel (0) target = $region13
    $region12: #{tpu_custom_call.1} parent=1 // pred_region
      %s22 = ssub.s32 2048, 2048
      %23 = vsyncadd [#allocation4], %s22
      %s24 = sshll.u32 [#allocation3], 4
      %s25 = int_to_ptr.vmem [resolvable:$true] %s24
      %30 = dma.hbm_to_vmem [thread:$0]  %s2, 2048, %s25, [#allocation4], 128, 128, 8
    $region13: #{tpu_custom_call.1} parent=1 // pred_fallthru
      _
    // Predicated region
    $region14: #{tpu_custom_call.1} parent=1 // pred_check
      _
    $region15: #{tpu_custom_call.1} parent=1 // pred_check_branch
      %32 = sbr.rel (0) target = $region17
    $region16: #{tpu_custom_call.1} parent=1 // pred_region
      _
    $region17: #{tpu_custom_call.1} parent=1 // pred_fallthru
      _
    // Predicated region
    $region18: #{tpu_custom_call.1} parent=1 // pred_check
      _
    $region19: #{tpu_custom_call.1} parent=1 // pred_check_branch
      %34 = sbr.rel (0) target = $region21
    $region20: #{tpu_custom_call.1} parent=1 // pred_region
      _
    $region21: #{tpu_custom_call.1} parent=1 // pred_fallthru
      _
    // Predicated region
    $region22: #{tpu_custom_call.1} parent=1 // pred_check
      _
    $region23: #{tpu_custom_call.1} parent=1 // pred_check_branch
      %36 = sbr.rel (0) target = $region25
    $region24: #{tpu_custom_call.1} parent=1 // pred_region
      _
    $region25: #{tpu_custom_call.1} parent=1 // pred_fallthru
      _
    // Predicated region
    $region26: #{tpu_custom_call.1} parent=1 // pred_check
      _
    $region27: #{tpu_custom_call.1} parent=1 // pred_check_branch
      %38 = sbr.rel (0) target = $region29
    $region28: #{tpu_custom_call.1} parent=1 // pred_region
      _
    $region29: #{tpu_custom_call.1} parent=1 // pred_fallthru
      _
    // Predicated region
    $region30: #{tpu_custom_call.1} parent=1 // pred_check
      _
    $region31: #{tpu_custom_call.1} parent=1 // pred_check_branch
      %40 = sbr.rel (0) target = $region33
    $region32: #{tpu_custom_call.1} parent=1 // pred_region
      %41 = dma.done [#allocation4], 2048
    $region33: #{tpu_custom_call.1} parent=1 // pred_fallthru
      _
    %v43 = vld [vmem:[%s0] sm:$0xff]
    %v44 = vld [vmem:[%s0 + $0x8] sm:$0xff]
    %v45 = vld [vmem:[%s0 + $0x10] sm:$0xff]
    %v46 = vld [vmem:[%s0 + $0x18] sm:$0xff]
    %v47 = vld [vmem:[%s0 + $0x20] sm:$0xff]
    %v48 = vld [vmem:[%s0 + $0x28] sm:$0xff]
    %v49 = vld [vmem:[%s0 + $0x30] sm:$0xff]
    %v50 = vld [vmem:[%s0 + $0x38] sm:$0xff]
    %v51 = vld [vmem:[%s0 + $0x40] sm:$0xff]
    %v52 = vld [vmem:[%s0 + $0x48] sm:$0xff]
    %v53 = vld [vmem:[%s0 + $0x50] sm:$0xff]
    %v54 = vld [vmem:[%s0 + $0x58] sm:$0xff]
    %v55 = vld [vmem:[%s0 + $0x60] sm:$0xff]
    %v56 = vld [vmem:[%s0 + $0x68] sm:$0xff]
    %v57 = vld [vmem:[%s0 + $0x70] sm:$0xff]
    %v58 = vld [vmem:[%s0 + $0x78] sm:$0xff]
    %v59 = vld [vmem:[%s0 + $0x80] sm:$0xff]
    %v60 = vld [vmem:[%s0 + $0x88] sm:$0xff]
    %v61 = vld [vmem:[%s0 + $0x90] sm:$0xff]
    %v62 = vld [vmem:[%s0 + $0x98] sm:$0xff]
    %v63 = vld [vmem:[%s0 + $0xa0] sm:$0xff]
    %v64 = vld [vmem:[%s0 + $0xa8] sm:$0xff]
    %v65 = vld [vmem:[%s0 + $0xb0] sm:$0xff]
    %v66 = vld [vmem:[%s0 + $0xb8] sm:$0xff]
    %v67 = vld [vmem:[%s0 + $0xc0] sm:$0xff]
    %v68 = vpack.c.bf16 %v44, %v43
    %v69 = vpack.c.bf16 %v46, %v45
    %v70 = vpack.c.bf16 %v48, %v47
    %v71 = vpack.c.bf16 %v50, %v49
    %v72 = vpack.c.bf16 %v52, %v51
    %v73 = vpack.c.bf16 %v54, %v53
    %v74 = vpack.c.bf16 %v56, %v55
    %v75 = vpack.c.bf16 %v58, %v57
    %v76 = vpack.c.bf16 %v60, %v59
    %v77 = vpack.c.bf16 %v62, %v61
    %v78 = vpack.c.bf16 %v64, %v63
    %v79 = vpack.c.bf16 %v66, %v65
    %v80 = vpack.c.bf16 %v67, %v67
    %v81 = vld [vmem:[#allocation3] sm:$0xff]
    %v82 = vld [vmem:[#allocation3 + $0x8] sm:$0xff]
    %v83 = vld [vmem:[#allocation3 + $0x10] sm:$0xff]
    %v84 = vld [vmem:[#allocation3 + $0x18] sm:$0xff]
    %v85 = vld [vmem:[#allocation3 + $0x20] sm:$0xff]
    %v86 = vld [vmem:[#allocation3 + $0x28] sm:$0xff]
    %v87 = vld [vmem:[#allocation3 + $0x30] sm:$0xff]
    %v88 = vld [vmem:[#allocation3 + $0x38] sm:$0xff]
    %v89 = vld [vmem:[#allocation3 + $0x40] sm:$0xff]
    %v90 = vld [vmem:[#allocation3 + $0x48] sm:$0xff]
    %v91 = vld [vmem:[#allocation3 + $0x50] sm:$0xff]
    %v92 = vld [vmem:[#allocation3 + $0x58] sm:$0xff]
    %v93 = vld [vmem:[#allocation3 + $0x60] sm:$0xff]
    %v94 = vld [vmem:[#allocation3 + $0x68] sm:$0xff]
    %v95 = vld [vmem:[#allocation3 + $0x70] sm:$0xff]
    %v96 = vld [vmem:[#allocation3 + $0x78] sm:$0xff]
    %v97 = vld [vmem:[%s1] sm:$0xff]
    %v98 = vld [vmem:[%s1 + $0x8] sm:$0xff]
    %v99 = vld [vmem:[%s1 + $0x10] sm:$0xff]
    %v100 = vld [vmem:[%s1 + $0x18] sm:$0xff]
    %v101 = vld [vmem:[%s1 + $0x20] sm:$0xff]
    %v102 = vld [vmem:[%s1 + $0x28] sm:$0xff]
    %v103 = vld [vmem:[%s1 + $0x30] sm:$0xff]
    %v104 = vld [vmem:[%s1 + $0x38] sm:$0xff]
    %v105 = vld [vmem:[%s1 + $0x40] sm:$0xff]
    %v106 = vld [vmem:[%s1 + $0x48] sm:$0xff]
    %v107 = vld [vmem:[%s1 + $0x50] sm:$0xff]
    %v108 = vld [vmem:[%s1 + $0x58] sm:$0xff]
    %v109 = vld [vmem:[%s1 + $0x60] sm:$0xff]
    %v110 = vld [vmem:[%s1 + $0x68] sm:$0xff]
    %v111 = vld [vmem:[%s1 + $0x70] sm:$0xff]
    %v112 = vld [vmem:[%s1 + $0x78] sm:$0xff]
    %v113 = vld [vmem:[%s1 + $0x80] sm:$0xff]
    %v114 = vld [vmem:[%s1 + $0x88] sm:$0xff]
    %v115 = vld [vmem:[%s1 + $0x90] sm:$0xff]
    %v116 = vld [vmem:[%s1 + $0x98] sm:$0xff]
    %v117 = vld [vmem:[%s1 + $0xa0] sm:$0xff]
    %v118 = vld [vmem:[%s1 + $0xa8] sm:$0xff]
    %v119 = vld [vmem:[%s1 + $0xb0] sm:$0xff]
    %v120 = vld [vmem:[%s1 + $0xb8] sm:$0xff]
    %v121 = vld [vmem:[%s1 + $0xc0] sm:$0xff]
    %v122 = vmul.f32 %v97, 0.5
    %v123 = vmul.f32 %v98, 0.5
    %v124 = vmul.f32 %v99, 0.5
    %v125 = vmul.f32 %v100, 0.5
    %v126 = vmul.f32 %v101, 0.5
    %v127 = vmul.f32 %v102, 0.5
    %v128 = vmul.f32 %v103, 0.5
    %v129 = vmul.f32 %v104, 0.5
    %v130 = vmul.f32 %v105, 0.5
    %v131 = vmul.f32 %v106, 0.5
    %v132 = vmul.f32 %v107, 0.5
    %v133 = vmul.f32 %v108, 0.5
    %v134 = vmul.f32 %v109, 0.5
    %v135 = vmul.f32 %v110, 0.5
    %v136 = vmul.f32 %v111, 0.5
    %v137 = vmul.f32 %v112, 0.5
    %v138 = vmul.f32 %v113, 0.5
    %v139 = vmul.f32 %v114, 0.5
    %v140 = vmul.f32 %v115, 0.5
    %v141 = vmul.f32 %v116, 0.5
    %v142 = vmul.f32 %v117, 0.5
    %v143 = vmul.f32 %v118, 0.5
    %v144 = vmul.f32 %v119, 0.5
    %v145 = vmul.f32 %v120, 0.5
    %v146 = vmul.f32 %v121, 0.5
    %v147 = vtanh.pop %v122
    %v148 = vtanh.pop %v123
    %v149 = vtanh.pop %v124
    %v150 = vtanh.pop %v125
    %v151 = vtanh.pop %v126
    %v152 = vtanh.pop %v127
    %v153 = vtanh.pop %v128
    %v154 = vtanh.pop %v129
    %v155 = vtanh.pop %v130
    %v156 = vtanh.pop %v131
    %v157 = vtanh.pop %v132
    %v158 = vtanh.pop %v133
    %v159 = vtanh.pop %v134
    %v160 = vtanh.pop %v135
    %v161 = vtanh.pop %v136
    %v162 = vtanh.pop %v137
    %v163 = vtanh.pop %v138
    %v164 = vtanh.pop %v139
    %v165 = vtanh.pop %v140
    %v166 = vtanh.pop %v141
    %v167 = vtanh.pop %v142
    %v168 = vtanh.pop %v143
    %v169 = vtanh.pop %v144
    %v170 = vtanh.pop %v145
    %v171 = vtanh.pop %v146
    %v172 = vadd.f32 %v147, 1.0
    %v173 = vadd.f32 %v148, 1.0
    %v174 = vadd.f32 %v149, 1.0
    %v175 = vadd.f32 %v150, 1.0
    %v176 = vadd.f32 %v151, 1.0
    %v177 = vadd.f32 %v152, 1.0
    %v178 = vadd.f32 %v153, 1.0
    %v179 = vadd.f32 %v154, 1.0
    %v180 = vadd.f32 %v155, 1.0
    %v181 = vadd.f32 %v156, 1.0
    %v182 = vadd.f32 %v157, 1.0
    %v183 = vadd.f32 %v158, 1.0
    %v184 = vadd.f32 %v159, 1.0
    %v185 = vadd.f32 %v160, 1.0
    %v186 = vadd.f32 %v161, 1.0
    %v187 = vadd.f32 %v162, 1.0
    %v188 = vadd.f32 %v163, 1.0
    %v189 = vadd.f32 %v164, 1.0
    %v190 = vadd.f32 %v165, 1.0
    %v191 = vadd.f32 %v166, 1.0
    %v192 = vadd.f32 %v167, 1.0
    %v193 = vadd.f32 %v168, 1.0
    %v194 = vadd.f32 %v169, 1.0
    %v195 = vadd.f32 %v170, 1.0
    %v196 = vadd.f32 %v171, 1.0
    %v197 = vmul.f32 %v172, 0.5
    %v198 = vmul.f32 %v173, 0.5
    %v199 = vmul.f32 %v174, 0.5
    %v200 = vmul.f32 %v175, 0.5
    %v201 = vmul.f32 %v176, 0.5
    %v202 = vmul.f32 %v177, 0.5
    %v203 = vmul.f32 %v178, 0.5
    %v204 = vmul.f32 %v179, 0.5
    %v205 = vmul.f32 %v180, 0.5
    %v206 = vmul.f32 %v181, 0.5
    %v207 = vmul.f32 %v182, 0.5
    %v208 = vmul.f32 %v183, 0.5
    %v209 = vmul.f32 %v184, 0.5
    %v210 = vmul.f32 %v185, 0.5
    %v211 = vmul.f32 %v186, 0.5
    %v212 = vmul.f32 %v187, 0.5
    %v213 = vmul.f32 %v188, 0.5
    %v214 = vmul.f32 %v189, 0.5
    %v215 = vmul.f32 %v190, 0.5
    %v216 = vmul.f32 %v191, 0.5
    %v217 = vmul.f32 %v192, 0.5
    %v218 = vmul.f32 %v193, 0.5
    %v219 = vmul.f32 %v194, 0.5
    %v220 = vmul.f32 %v195, 0.5
    %v221 = vmul.f32 %v196, 0.5
    %v222 = vmul.f32 %v97, %v197
    %v223 = vmul.f32 %v98, %v198
    %v224 = vmul.f32 %v99, %v199
    %v225 = vmul.f32 %v100, %v200
    %v226 = vmul.f32 %v101, %v201
    %v227 = vmul.f32 %v102, %v202
    %v228 = vmul.f32 %v103, %v203
    %v229 = vmul.f32 %v104, %v204
    %v230 = vmul.f32 %v105, %v205
    %v231 = vmul.f32 %v106, %v206
    %v232 = vmul.f32 %v107, %v207
    %v233 = vmul.f32 %v108, %v208
    %v234 = vmul.f32 %v109, %v209
    %v235 = vmul.f32 %v110, %v210
    %v236 = vmul.f32 %v111, %v211
    %v237 = vmul.f32 %v112, %v212
    %v238 = vmul.f32 %v113, %v213
    %v239 = vmul.f32 %v114, %v214
    %v240 = vmul.f32 %v115, %v215
    %v241 = vmul.f32 %v116, %v216
    %v242 = vmul.f32 %v117, %v217
    %v243 = vmul.f32 %v118, %v218
    %v244 = vmul.f32 %v119, %v219
    %v245 = vmul.f32 %v120, %v220
    %v246 = vmul.f32 %v121, %v221
    %v247 = vpack.c.bf16 %v223, %v222
    %v248 = vpack.c.bf16 %v225, %v224
    %v249 = vpack.c.bf16 %v227, %v226
    %v250 = vpack.c.bf16 %v229, %v228
    %v251 = vpack.c.bf16 %v231, %v230
    %v252 = vpack.c.bf16 %v233, %v232
    %v253 = vpack.c.bf16 %v235, %v234
    %v254 = vpack.c.bf16 %v237, %v236
    %v255 = vpack.c.bf16 %v239, %v238
    %v256 = vpack.c.bf16 %v241, %v240
    %v257 = vpack.c.bf16 %v243, %v242
    %v258 = vpack.c.bf16 %v245, %v244
    %v259 = vpack.c.bf16 %v246, %v246
    %v260 = vld [vmem:[%s3] sm:$0xff]
    %v262 = vunpack.c.l.b16 %v260
    %v263 = vunpack.c.h.b16 %v260
    %v264 = vpack.c.b16 %v262, %v262
    %v265 = vpack.c.b16 %v263, %v263
    %vm266 = vcmask 64512
    %v268 = vsel %vm266, %v247, 0
    %v271 = vsel %vm266, %v248, 0
    %v274 = vsel %vm266, %v249, 0
    %v277 = vsel %vm266, %v250, 0
    %v280 = vsel %vm266, %v251, 0
    %v283 = vsel %vm266, %v252, 0
    %v286 = vsel %vm266, %v253, 0
    %v289 = vsel %vm266, %v254, 0
    %v292 = vsel %vm266, %v255, 0
    %v295 = vsel %vm266, %v256, 0
    %v298 = vsel %vm266, %v257, 0
    %v301 = vsel %vm266, %v258, 0
    %v304 = vsel %vm266, %v259, 0
    %vm306 = vcmask 1043456
    %v308 = vsel %vm306, %v264, 0
    %v311 = vsel %vm306, %v265, 0
    %313 = vmatprep.subr.bf16.mxu0 %v311
    %314 = vmatpush1.bf16.msra.mxu0 %v308
    %315 = vmatprep.subr.bf16.mxu0 0
    %316 = vmatpush1.bf16.msra.mxu0 0
    %317 = vmatprep.subr.bf16.mxu0 0
    %318 = vmatpush1.bf16.msra.mxu0 0
    %319 = vmatprep.subr.bf16.mxu0 0
    %320 = vmatpush1.bf16.msra.mxu0 0
    %321 = vmatprep.subr.bf16.mxu0 0
    %322 = vmatpush1.bf16.msra.mxu0 0
    %323 = vmatprep.subr.bf16.mxu0 0
    %324 = vmatpush1.bf16.msra.mxu0 0
    %325 = vmatprep.subr.bf16.mxu0 0
    %326 = vmatpush1.bf16.msra.mxu0 0
    %327 = vmatprep.subr.bf16.mxu0 0
    %328 = vmatpush1.bf16.msra.mxu0 0
    %329 = vmatprep.subr.bf16.mxu0 0
    %330 = vmatpush1.bf16.msra.mxu0 0
    %331 = vmatprep.subr.bf16.mxu0 0
    %332 = vmatpush1.bf16.msra.mxu0 0
    %333 = vmatprep.subr.bf16.mxu0 0
    %334 = vmatpush1.bf16.msra.mxu0 0
    %335 = vmatprep.subr.bf16.mxu0 0
    %336 = vmatpush1.bf16.msra.mxu0 0
    %337 = vmatprep.subr.bf16.mxu0 0
    %338 = vmatpush1.bf16.msra.mxu0 0
    %339 = vmatprep.subr.bf16.mxu0 0
    %340 = vmatpush1.bf16.msra.mxu0 0
    %341 = vmatprep.subr.bf16.mxu0 0
    %342 = vmatpush1.bf16.msra.mxu0 0
    %343 = vmatprep.subr.bf16.mxu0 0
    %344 = vmatpush1.bf16.msra.mxu0 0
    %345 = vmatprep.mubr.bf16.mxu0 0
    %346 = vmatmul.mubr.bf16.gmra.mrb[0].mxu0 %v268
    %v347 = vpop.f32.mrb[0].mxu0
    %v348 = vadd.f32 0.0, %v347
    %v349 = vpop.f32.mrb[0].mxu0
    %v350 = vadd.f32 0.0, %v349
    %v351 = vpop.f32.mrb[0].mxu0
    %v352 = vadd.f32 0.0, %v351
    %v353 = vpop.f32.mrb[0].mxu0
    %v354 = vadd.f32 0.0, %v353
    %355 = vmatprep.mubr.bf16.mxu0 0
    %356 = vmatmul.mubr.bf16.gmra.mrb[0].mxu0 %v271
    %v357 = vpop.f32.mrb[0].mxu0
    %v358 = vadd.f32 0.0, %v357
    %v359 = vpop.f32.mrb[0].mxu0
    %v360 = vadd.f32 0.0, %v359
    %v361 = vpop.f32.mrb[0].mxu0
    %v362 = vadd.f32 0.0, %v361
    %v363 = vpop.f32.mrb[0].mxu0
    %v364 = vadd.f32 0.0, %v363
    %365 = vmatprep.mubr.bf16.mxu0 0
    %366 = vmatmul.mubr.bf16.gmra.mrb[0].mxu0 %v274
    %v367 = vpop.f32.mrb[0].mxu0
    %v368 = vadd.f32 0.0, %v367
    %v369 = vpop.f32.mrb[0].mxu0
    %v370 = vadd.f32 0.0, %v369
    %v371 = vpop.f32.mrb[0].mxu0
    %v372 = vadd.f32 0.0, %v371
    %v373 = vpop.f32.mrb[0].mxu0
    %v374 = vadd.f32 0.0, %v373
    %375 = vmatprep.mubr.bf16.mxu0 0
    %376 = vmatmul.mubr.bf16.gmra.mrb[0].mxu0 %v277
    %v377 = vpop.f32.mrb[0].mxu0
    %v378 = vadd.f32 0.0, %v377
    %v379 = vpop.f32.mrb[0].mxu0
    %v380 = vadd.f32 0.0, %v379
    %v381 = vpop.f32.mrb[0].mxu0
    %v382 = vadd.f32 0.0, %v381
    %v383 = vpop.f32.mrb[0].mxu0
    %v384 = vadd.f32 0.0, %v383
    %385 = vmatprep.mubr.bf16.mxu0 0
    %386 = vmatmul.mubr.bf16.gmra.mrb[0].mxu0 %v280
    %v387 = vpop.f32.mrb[0].mxu0
    %v388 = vadd.f32 0.0, %v387
    %v389 = vpop.f32.mrb[0].mxu0
    %v390 = vadd.f32 0.0, %v389
    %v391 = vpop.f32.mrb[0].mxu0
    %v392 = vadd.f32 0.0, %v391
    %v393 = vpop.f32.mrb[0].mxu0
    %v394 = vadd.f32 0.0, %v393
    %395 = vmatprep.mubr.bf16.mxu0 0
    %396 = vmatmul.mubr.bf16.gmra.mrb[0].mxu0 %v283
    %v397 = vpop.f32.mrb[0].mxu0
    %v398 = vadd.f32 0.0, %v397
    %v399 = vpop.f32.mrb[0].mxu0
    %v400 = vadd.f32 0.0, %v399
    %v401 = vpop.f32.mrb[0].mxu0
    %v402 = vadd.f32 0.0, %v401
    %v403 = vpop.f32.mrb[0].mxu0
    %v404 = vadd.f32 0.0, %v403
    %405 = vmatprep.mubr.bf16.mxu0 0
    %406 = vmatmul.mubr.bf16.gmra.mrb[0].mxu0 %v286
    %v407 = vpop.f32.mrb[0].mxu0
    %v408 = vadd.f32 0.0, %v407
    %v409 = vpop.f32.mrb[0].mxu0
    %v410 = vadd.f32 0.0, %v409
    %v411 = vpop.f32.mrb[0].mxu0
    %v412 = vadd.f32 0.0, %v411
    %v413 = vpop.f32.mrb[0].mxu0
    %v414 = vadd.f32 0.0, %v413
    %415 = vmatprep.mubr.bf16.mxu0 0
    %416 = vmatmul.mubr.bf16.gmra.mrb[0].mxu0 %v289
    %v417 = vpop.f32.mrb[0].mxu0
    %v418 = vadd.f32 0.0, %v417
    %v419 = vpop.f32.mrb[0].mxu0
    %v420 = vadd.f32 0.0, %v419
    %v421 = vpop.f32.mrb[0].mxu0
    %v422 = vadd.f32 0.0, %v421
    %v423 = vpop.f32.mrb[0].mxu0
    %v424 = vadd.f32 0.0, %v423
    %425 = vmatprep.mubr.bf16.mxu0 0
    %426 = vmatmul.mubr.bf16.gmra.mrb[0].mxu0 %v292
    %v427 = vpop.f32.mrb[0].mxu0
    %v428 = vadd.f32 0.0, %v427
    %v429 = vpop.f32.mrb[0].mxu0
    %v430 = vadd.f32 0.0, %v429
    %v431 = vpop.f32.mrb[0].mxu0
    %v432 = vadd.f32 0.0, %v431
    %v433 = vpop.f32.mrb[0].mxu0
    %v434 = vadd.f32 0.0, %v433
    %435 = vmatprep.mubr.bf16.mxu0 0
    %436 = vmatmul.mubr.bf16.gmra.mrb[0].mxu0 %v295
    %v437 = vpop.f32.mrb[0].mxu0
    %v438 = vadd.f32 0.0, %v437
    %v439 = vpop.f32.mrb[0].mxu0
    %v440 = vadd.f32 0.0, %v439
    %v441 = vpop.f32.mrb[0].mxu0
    %v442 = vadd.f32 0.0, %v441
    %v443 = vpop.f32.mrb[0].mxu0
    %v444 = vadd.f32 0.0, %v443
    %445 = vmatprep.mubr.bf16.mxu0 0
    %446 = vmatmul.mubr.bf16.gmra.mrb[0].mxu0 %v298
    %v447 = vpop.f32.mrb[0].mxu0
    %v448 = vadd.f32 0.0, %v447
    %v449 = vpop.f32.mrb[0].mxu0
    %v450 = vadd.f32 0.0, %v449
    %v451 = vpop.f32.mrb[0].mxu0
    %v452 = vadd.f32 0.0, %v451
    %v453 = vpop.f32.mrb[0].mxu0
    %v454 = vadd.f32 0.0, %v453
    %455 = vmatprep.mubr.bf16.mxu0 0
    %456 = vmatmul.mubr.bf16.gmra.mrb[0].mxu0 %v301
    %v457 = vpop.f32.mrb[0].mxu0
    %v458 = vadd.f32 0.0, %v457
    %v459 = vpop.f32.mrb[0].mxu0
    %v460 = vadd.f32 0.0, %v459
    %v461 = vpop.f32.mrb[0].mxu0
    %v462 = vadd.f32 0.0, %v461
    %v463 = vpop.f32.mrb[0].mxu0
    %v464 = vadd.f32 0.0, %v463
    %465 = vmatprep.mubr.bf16.mxu0 0
    %466 = vmatmul.mubr.bf16.gmra.mrb[0].mxu0 %v304
    %v467 = vpop.f32.mrb[0].mxu0
    %v468 = vadd.f32 0.0, %v467
    %v469 = vpop.f32.mrb[0].mxu0
    %v470 = vadd.f32 0.0, %v469
    %v471 = vpop.f32.mrb[0].mxu0
    %v472 = vpop.f32.mrb[0].mxu0
    %473 = vdwg.mxu0
    %v490 = vunpack.c.l.b16 %v81
    %v491 = vunpack.c.h.b16 %v81
    %v492 = vunpack.c.l.b16 %v82
    %v493 = vunpack.c.h.b16 %v82
    %v494 = vunpack.c.l.b16 %v83
    %v495 = vunpack.c.h.b16 %v83
    %v496 = vunpack.c.l.b16 %v84
    %v497 = vunpack.c.h.b16 %v84
    %v498 = vunpack.c.l.b16 %v85
    %v499 = vunpack.c.h.b16 %v85
    %v500 = vunpack.c.l.b16 %v86
    %v501 = vunpack.c.h.b16 %v86
    %v502 = vunpack.c.l.b16 %v87
    %v503 = vunpack.c.h.b16 %v87
    %v504 = vunpack.c.l.b16 %v88
    %v505 = vunpack.c.h.b16 %v88
    %v506 = vunpack.c.l.b16 %v89
    %v507 = vunpack.c.h.b16 %v89
    %v508 = vunpack.c.l.b16 %v90
    %v509 = vunpack.c.h.b16 %v90
    %v510 = vunpack.c.l.b16 %v91
    %v511 = vunpack.c.h.b16 %v91
    %v512 = vunpack.c.l.b16 %v92
    %v513 = vunpack.c.h.b16 %v92
    %v514 = vunpack.c.l.b16 %v93
    %v515 = vunpack.c.h.b16 %v93
    %v516 = vunpack.c.l.b16 %v94
    %v517 = vunpack.c.h.b16 %v94
    %v518 = vunpack.c.l.b16 %v95
    %v519 = vunpack.c.h.b16 %v95
    %v520 = vunpack.c.l.b16 %v96
    %v521 = vunpack.c.h.b16 %v96
    %v522 = vpack.c.b16 %v492, %v490
    %v523 = vpack.c.b16 %v493, %v491
    %v524 = vpack.c.b16 %v496, %v494
    %v525 = vpack.c.b16 %v497, %v495
    %v526 = vpack.c.b16 %v500, %v498
    %v527 = vpack.c.b16 %v501, %v499
    %v528 = vpack.c.b16 %v504, %v502
    %v529 = vpack.c.b16 %v505, %v503
    %v530 = vpack.c.b16 %v508, %v506
    %v531 = vpack.c.b16 %v509, %v507
    %v532 = vpack.c.b16 %v512, %v510
    %v533 = vpack.c.b16 %v513, %v511
    %v534 = vpack.c.b16 %v516, %v514
    %v535 = vpack.c.b16 %v517, %v515
    %v536 = vpack.c.b16 %v520, %v518
    %v537 = vpack.c.b16 %v521, %v519
    %554 = vmatprep.subr.bf16.mxu0 %v523
    %555 = vmatpush1.bf16.msra.mxu0 %v522
    %556 = vmatprep.subr.bf16.mxu0 %v525
    %557 = vmatpush1.bf16.msra.mxu0 %v524
    %558 = vmatprep.subr.bf16.mxu0 %v527
    %559 = vmatpush1.bf16.msra.mxu0 %v526
    %560 = vmatprep.subr.bf16.mxu0 %v529
    %561 = vmatpush1.bf16.msra.mxu0 %v528
    %562 = vmatprep.subr.bf16.mxu0 %v531
    %563 = vmatpush1.bf16.msra.mxu0 %v530
    %564 = vmatprep.subr.bf16.mxu0 %v533
    %565 = vmatpush1.bf16.msra.mxu0 %v532
    %566 = vmatprep.subr.bf16.mxu0 %v535
    %567 = vmatpush1.bf16.msra.mxu0 %v534
    %568 = vmatprep.subr.bf16.mxu0 %v537
    %569 = vmatpush1.bf16.msra.mxu0 %v536
    %570 = vmatprep.subr.bf16.mxu0 0
    %571 = vmatpush1.bf16.msra.mxu0 0
    %572 = vmatprep.subr.bf16.mxu0 0
    %573 = vmatpush1.bf16.msra.mxu0 0
    %574 = vmatprep.subr.bf16.mxu0 0
    %575 = vmatpush1.bf16.msra.mxu0 0
    %576 = vmatprep.subr.bf16.mxu0 0
    %577 = vmatpush1.bf16.msra.mxu0 0
    %578 = vmatprep.subr.bf16.mxu0 0
    %579 = vmatpush1.bf16.msra.mxu0 0
    %580 = vmatprep.subr.bf16.mxu0 0
    %581 = vmatpush1.bf16.msra.mxu0 0
    %582 = vmatprep.subr.bf16.mxu0 0
    %583 = vmatpush1.bf16.msra.mxu0 0
    %584 = vmatprep.subr.bf16.mxu0 0
    %585 = vmatpush1.bf16.msra.mxu0 0
    %586 = vmatprep.mubr.bf16.mxu0 0
    %587 = vmatmul.mubr.bf16.gmra.mrb[0].mxu0 %v68
    %v588 = vpop.f32.mrb[0].mxu0
    %v589 = vadd.f32 %v348, %v588
    %v590 = vpop.f32.mrb[0].mxu0
    %v591 = vadd.f32 %v350, %v590
    %v592 = vpop.f32.mrb[0].mxu0
    %v593 = vadd.f32 %v352, %v592
    %v594 = vpop.f32.mrb[0].mxu0
    %v595 = vadd.f32 %v354, %v594
    %596 = vmatprep.mubr.bf16.mxu0 0
    %597 = vmatmul.mubr.bf16.gmra.mrb[0].mxu0 %v69
    %v598 = vpop.f32.mrb[0].mxu0
    %v599 = vadd.f32 %v358, %v598
    %v600 = vpop.f32.mrb[0].mxu0
    %v601 = vadd.f32 %v360, %v600
    %v602 = vpop.f32.mrb[0].mxu0
    %v603 = vadd.f32 %v362, %v602
    %v604 = vpop.f32.mrb[0].mxu0
    %v605 = vadd.f32 %v364, %v604
    %606 = vmatprep.mubr.bf16.mxu0 0
    %607 = vmatmul.mubr.bf16.gmra.mrb[0].mxu0 %v70
    %v608 = vpop.f32.mrb[0].mxu0
    %v609 = vadd.f32 %v368, %v608
    %v610 = vpop.f32.mrb[0].mxu0
    %v611 = vadd.f32 %v370, %v610
    %v612 = vpop.f32.mrb[0].mxu0
    %v613 = vadd.f32 %v372, %v612
    %v614 = vpop.f32.mrb[0].mxu0
    %v615 = vadd.f32 %v374, %v614
    %616 = vmatprep.mubr.bf16.mxu0 0
    %617 = vmatmul.mubr.bf16.gmra.mrb[0].mxu0 %v71
    %v618 = vpop.f32.mrb[0].mxu0
    %v619 = vadd.f32 %v378, %v618
    %v620 = vpop.f32.mrb[0].mxu0
    %v621 = vadd.f32 %v380, %v620
    %v622 = vpop.f32.mrb[0].mxu0
    %v623 = vadd.f32 %v382, %v622
    %v624 = vpop.f32.mrb[0].mxu0
    %v625 = vadd.f32 %v384, %v624
    %626 = vmatprep.mubr.bf16.mxu0 0
    %627 = vmatmul.mubr.bf16.gmra.mrb[0].mxu0 %v72
    %v628 = vpop.f32.mrb[0].mxu0
    %v629 = vadd.f32 %v388, %v628
    %v630 = vpop.f32.mrb[0].mxu0
    %v631 = vadd.f32 %v390, %v630
    %v632 = vpop.f32.mrb[0].mxu0
    %v633 = vadd.f32 %v392, %v632
    %v634 = vpop.f32.mrb[0].mxu0
    %v635 = vadd.f32 %v394, %v634
    %636 = vmatprep.mubr.bf16.mxu0 0
    %637 = vmatmul.mubr.bf16.gmra.mrb[0].mxu0 %v73
    %v638 = vpop.f32.mrb[0].mxu0
    %v639 = vadd.f32 %v398, %v638
    %v640 = vpop.f32.mrb[0].mxu0
    %v641 = vadd.f32 %v400, %v640
    %v642 = vpop.f32.mrb[0].mxu0
    %v643 = vadd.f32 %v402, %v642
    %v644 = vpop.f32.mrb[0].mxu0
    %v645 = vadd.f32 %v404, %v644
    %646 = vmatprep.mubr.bf16.mxu0 0
    %647 = vmatmul.mubr.bf16.gmra.mrb[0].mxu0 %v74
    %v648 = vpop.f32.mrb[0].mxu0
    %v649 = vadd.f32 %v408, %v648
    %v650 = vpop.f32.mrb[0].mxu0
    %v651 = vadd.f32 %v410, %v650
    %v652 = vpop.f32.mrb[0].mxu0
    %v653 = vadd.f32 %v412, %v652
    %v654 = vpop.f32.mrb[0].mxu0
    %v655 = vadd.f32 %v414, %v654
    %656 = vmatprep.mubr.bf16.mxu0 0
    %657 = vmatmul.mubr.bf16.gmra.mrb[0].mxu0 %v75
    %v658 = vpop.f32.mrb[0].mxu0
    %v659 = vadd.f32 %v418, %v658
    %v660 = vpop.f32.mrb[0].mxu0
    %v661 = vadd.f32 %v420, %v660
    %v662 = vpop.f32.mrb[0].mxu0
    %v663 = vadd.f32 %v422, %v662
    %v664 = vpop.f32.mrb[0].mxu0
    %v665 = vadd.f32 %v424, %v664
    %666 = vmatprep.mubr.bf16.mxu0 0
    %667 = vmatmul.mubr.bf16.gmra.mrb[0].mxu0 %v76
    %v668 = vpop.f32.mrb[0].mxu0
    %v669 = vadd.f32 %v428, %v668
    %v670 = vpop.f32.mrb[0].mxu0
    %v671 = vadd.f32 %v430, %v670
    %v672 = vpop.f32.mrb[0].mxu0
    %v673 = vadd.f32 %v432, %v672
    %v674 = vpop.f32.mrb[0].mxu0
    %v675 = vadd.f32 %v434, %v674
    %676 = vmatprep.mubr.bf16.mxu0 0
    %677 = vmatmul.mubr.bf16.gmra.mrb[0].mxu0 %v77
    %v678 = vpop.f32.mrb[0].mxu0
    %v679 = vadd.f32 %v438, %v678
    %v680 = vpop.f32.mrb[0].mxu0
    %v681 = vadd.f32 %v440, %v680
    %v682 = vpop.f32.mrb[0].mxu0
    %v683 = vadd.f32 %v442, %v682
    %v684 = vpop.f32.mrb[0].mxu0
    %v685 = vadd.f32 %v444, %v684
    %686 = vmatprep.mubr.bf16.mxu0 0
    %687 = vmatmul.mubr.bf16.gmra.mrb[0].mxu0 %v78
    %v688 = vpop.f32.mrb[0].mxu0
    %v689 = vadd.f32 %v448, %v688
    %v690 = vpop.f32.mrb[0].mxu0
    %v691 = vadd.f32 %v450, %v690
    %v692 = vpop.f32.mrb[0].mxu0
    %v693 = vadd.f32 %v452, %v692
    %v694 = vpop.f32.mrb[0].mxu0
    %v695 = vadd.f32 %v454, %v694
    %696 = vmatprep.mubr.bf16.mxu0 0
    %697 = vmatmul.mubr.bf16.gmra.mrb[0].mxu0 %v79
    %v698 = vpop.f32.mrb[0].mxu0
    %v699 = vadd.f32 %v458, %v698
    %v700 = vpop.f32.mrb[0].mxu0
    %v701 = vadd.f32 %v460, %v700
    %v702 = vpop.f32.mrb[0].mxu0
    %v703 = vadd.f32 %v462, %v702
    %v704 = vpop.f32.mrb[0].mxu0
    %v705 = vadd.f32 %v464, %v704
    %706 = vmatprep.mubr.bf16.mxu0 0
    %707 = vmatmul.mubr.bf16.gmra.mrb[0].mxu0 %v80
    %v708 = vpop.f32.mrb[0].mxu0
    %v709 = vadd.f32 %v468, %v708
    %v710 = vpop.f32.mrb[0].mxu0
    %v711 = vadd.f32 %v470, %v710
    %v712 = vpop.f32.mrb[0].mxu0
    %v713 = vpop.f32.mrb[0].mxu0
    %714 = vdwg.mxu0
    %v715 = vld [vmem:[%s4] sm:$0x3]
    %v717 = vlaneseq
    %v718 = vshrl.u32 %v717, 7
    %v719 = vsub.s32 0, %v718
    %v720 = vrot.slane %v715, %v719
    %v721 = vlaneseq
    %v722 = vshrl.u32 %v721, 7
    %v723 = vsub.s32 1, %v722
    %v724 = vrot.slane %v715, %v723
    %v727 = vadd.f32 %v589, %v720
    %v728 = vadd.f32 %v591, %v724
    %v729 = vadd.f32 %v593, %v720
    %v730 = vadd.f32 %v595, %v724
    %v731 = vadd.f32 %v599, %v720
    %v732 = vadd.f32 %v601, %v724
    %v733 = vadd.f32 %v603, %v720
    %v734 = vadd.f32 %v605, %v724
    %v735 = vadd.f32 %v609, %v720
    %v736 = vadd.f32 %v611, %v724
    %v737 = vadd.f32 %v613, %v720
    %v738 = vadd.f32 %v615, %v724
    %v739 = vadd.f32 %v619, %v720
    %v740 = vadd.f32 %v621, %v724
    %v741 = vadd.f32 %v623, %v720
    %v742 = vadd.f32 %v625, %v724
    %v743 = vadd.f32 %v629, %v720
    %v744 = vadd.f32 %v631, %v724
    %v745 = vadd.f32 %v633, %v720
    %v746 = vadd.f32 %v635, %v724
    %v747 = vadd.f32 %v639, %v720
    %v748 = vadd.f32 %v641, %v724
    %v749 = vadd.f32 %v643, %v720
    %v750 = vadd.f32 %v645, %v724
    %v751 = vadd.f32 %v649, %v720
    %v752 = vadd.f32 %v651, %v724
    %v753 = vadd.f32 %v653, %v720
    %v754 = vadd.f32 %v655, %v724
    %v755 = vadd.f32 %v659, %v720
    %v756 = vadd.f32 %v661, %v724
    %v757 = vadd.f32 %v663, %v720
    %v758 = vadd.f32 %v665, %v724
    %v759 = vadd.f32 %v669, %v720
    %v760 = vadd.f32 %v671, %v724
    %v761 = vadd.f32 %v673, %v720
    %v762 = vadd.f32 %v675, %v724
    %v763 = vadd.f32 %v679, %v720
    %v764 = vadd.f32 %v681, %v724
    %v765 = vadd.f32 %v683, %v720
    %v766 = vadd.f32 %v685, %v724
    %v767 = vadd.f32 %v689, %v720
    %v768 = vadd.f32 %v691, %v724
    %v769 = vadd.f32 %v693, %v720
    %v770 = vadd.f32 %v695, %v724
    %v771 = vadd.f32 %v699, %v720
    %v772 = vadd.f32 %v701, %v724
    %v773 = vadd.f32 %v703, %v720
    %v774 = vadd.f32 %v705, %v724
    %v775 = vadd.f32 %v709, %v720
    %v776 = vadd.f32 %v711, %v724
    %v777 = vmul.f32 %v727, 0.01
    %v778 = vmul.f32 %v728, 0.01
    %v779 = vmul.f32 %v729, 0.01
    %v780 = vmul.f32 %v730, 0.01
    %v781 = vmul.f32 %v731, 0.01
    %v782 = vmul.f32 %v732, 0.01
    %v783 = vmul.f32 %v733, 0.01
    %v784 = vmul.f32 %v734, 0.01
    %v785 = vmul.f32 %v735, 0.01
    %v786 = vmul.f32 %v736, 0.01
    %v787 = vmul.f32 %v737, 0.01
    %v788 = vmul.f32 %v738, 0.01
    %v789 = vmul.f32 %v739, 0.01
    %v790 = vmul.f32 %v740, 0.01
    %v791 = vmul.f32 %v741, 0.01
    %v792 = vmul.f32 %v742, 0.01
    %v793 = vmul.f32 %v743, 0.01
    %v794 = vmul.f32 %v744, 0.01
    %v795 = vmul.f32 %v745, 0.01
    %v796 = vmul.f32 %v746, 0.01
    %v797 = vmul.f32 %v747, 0.01
    %v798 = vmul.f32 %v748, 0.01
    %v799 = vmul.f32 %v749, 0.01
    %v800 = vmul.f32 %v750, 0.01
    %v801 = vmul.f32 %v751, 0.01
    %v802 = vmul.f32 %v752, 0.01
    %v803 = vmul.f32 %v753, 0.01
    %v804 = vmul.f32 %v754, 0.01
    %v805 = vmul.f32 %v755, 0.01
    %v806 = vmul.f32 %v756, 0.01
    %v807 = vmul.f32 %v757, 0.01
    %v808 = vmul.f32 %v758, 0.01
    %v809 = vmul.f32 %v759, 0.01
    %v810 = vmul.f32 %v760, 0.01
    %v811 = vmul.f32 %v761, 0.01
    %v812 = vmul.f32 %v762, 0.01
    %v813 = vmul.f32 %v763, 0.01
    %v814 = vmul.f32 %v764, 0.01
    %v815 = vmul.f32 %v765, 0.01
    %v816 = vmul.f32 %v766, 0.01
    %v817 = vmul.f32 %v767, 0.01
    %v818 = vmul.f32 %v768, 0.01
    %v819 = vmul.f32 %v769, 0.01
    %v820 = vmul.f32 %v770, 0.01
    %v821 = vmul.f32 %v771, 0.01
    %v822 = vmul.f32 %v772, 0.01
    %v823 = vmul.f32 %v773, 0.01
    %v824 = vmul.f32 %v774, 0.01
    %v825 = vmul.f32 %v775, 0.01
    %v826 = vmul.f32 %v776, 0.01
    %v827 = vmax.f32 %v727, %v777
    %v828 = vmax.f32 %v728, %v778
    %v829 = vmax.f32 %v729, %v779
    %v830 = vmax.f32 %v730, %v780
    %v831 = vmax.f32 %v731, %v781
    %v832 = vmax.f32 %v732, %v782
    %v833 = vmax.f32 %v733, %v783
    %v834 = vmax.f32 %v734, %v784
    %v835 = vmax.f32 %v735, %v785
    %v836 = vmax.f32 %v736, %v786
    %v837 = vmax.f32 %v737, %v787
    %v838 = vmax.f32 %v738, %v788
    %v839 = vmax.f32 %v739, %v789
    %v840 = vmax.f32 %v740, %v790
    %v841 = vmax.f32 %v741, %v791
    %v842 = vmax.f32 %v742, %v792
    %v843 = vmax.f32 %v743, %v793
    %v844 = vmax.f32 %v744, %v794
    %v845 = vmax.f32 %v745, %v795
    %v846 = vmax.f32 %v746, %v796
    %v847 = vmax.f32 %v747, %v797
    %v848 = vmax.f32 %v748, %v798
    %v849 = vmax.f32 %v749, %v799
    %v850 = vmax.f32 %v750, %v800
    %v851 = vmax.f32 %v751, %v801
    %v852 = vmax.f32 %v752, %v802
    %v853 = vmax.f32 %v753, %v803
    %v854 = vmax.f32 %v754, %v804
    %v855 = vmax.f32 %v755, %v805
    %v856 = vmax.f32 %v756, %v806
    %v857 = vmax.f32 %v757, %v807
    %v858 = vmax.f32 %v758, %v808
    %v859 = vmax.f32 %v759, %v809
    %v860 = vmax.f32 %v760, %v810
    %v861 = vmax.f32 %v761, %v811
    %v862 = vmax.f32 %v762, %v812
    %v863 = vmax.f32 %v763, %v813
    %v864 = vmax.f32 %v764, %v814
    %v865 = vmax.f32 %v765, %v815
    %v866 = vmax.f32 %v766, %v816
    %v867 = vmax.f32 %v767, %v817
    %v868 = vmax.f32 %v768, %v818
    %v869 = vmax.f32 %v769, %v819
    %v870 = vmax.f32 %v770, %v820
    %v871 = vmax.f32 %v771, %v821
    %v872 = vmax.f32 %v772, %v822
    %v873 = vmax.f32 %v773, %v823
    %v874 = vmax.f32 %v774, %v824
    %v875 = vmax.f32 %v775, %v825
    %v876 = vmax.f32 %v776, %v826
    %v877 = vld [vmem:[%s5] sm:$0x3]
    %v879 = vlaneseq
    %v880 = vshrl.u32 %v879, 7
    %v881 = vsub.s32 0, %v880
    %v882 = vrot.slane %v877, %v881
    %v883 = vlaneseq
    %v884 = vshrl.u32 %v883, 7
    %v885 = vsub.s32 1, %v884
    %v886 = vrot.slane %v877, %v885
    %v889 = vmul.f32 %v827, %v882
    %v890 = vmul.f32 %v828, %v886
    %v891 = vmul.f32 %v829, %v882
    %v892 = vmul.f32 %v830, %v886
    %v893 = vmul.f32 %v831, %v882
    %v894 = vmul.f32 %v832, %v886
    %v895 = vmul.f32 %v833, %v882
    %v896 = vmul.f32 %v834, %v886
    %v897 = vmul.f32 %v835, %v882
    %v898 = vmul.f32 %v836, %v886
    %v899 = vmul.f32 %v837, %v882
    %v900 = vmul.f32 %v838, %v886
    %v901 = vmul.f32 %v839, %v882
    %v902 = vmul.f32 %v840, %v886
    %v903 = vmul.f32 %v841, %v882
    %v904 = vmul.f32 %v842, %v886
    %v905 = vmul.f32 %v843, %v882
    %v906 = vmul.f32 %v844, %v886
    %v907 = vmul.f32 %v845, %v882
    %v908 = vmul.f32 %v846, %v886
    %v909 = vmul.f32 %v847, %v882
    %v910 = vmul.f32 %v848, %v886
    %v911 = vmul.f32 %v849, %v882
    %v912 = vmul.f32 %v850, %v886
    %v913 = vmul.f32 %v851, %v882
    %v914 = vmul.f32 %v852, %v886
    %v915 = vmul.f32 %v853, %v882
    %v916 = vmul.f32 %v854, %v886
    %v917 = vmul.f32 %v855, %v882
    %v918 = vmul.f32 %v856, %v886
    %v919 = vmul.f32 %v857, %v882
    %v920 = vmul.f32 %v858, %v886
    %v921 = vmul.f32 %v859, %v882
    %v922 = vmul.f32 %v860, %v886
    %v923 = vmul.f32 %v861, %v882
    %v924 = vmul.f32 %v862, %v886
    %v925 = vmul.f32 %v863, %v882
    %v926 = vmul.f32 %v864, %v886
    %v927 = vmul.f32 %v865, %v882
    %v928 = vmul.f32 %v866, %v886
    %v929 = vmul.f32 %v867, %v882
    %v930 = vmul.f32 %v868, %v886
    %v931 = vmul.f32 %v869, %v882
    %v932 = vmul.f32 %v870, %v886
    %v933 = vmul.f32 %v871, %v882
    %v934 = vmul.f32 %v872, %v886
    %v935 = vmul.f32 %v873, %v882
    %v936 = vmul.f32 %v874, %v886
    %v937 = vmul.f32 %v875, %v882
    %v938 = vmul.f32 %v876, %v886
    %v939 = vadd.f32 %v889, %v890
    %940 = vadd.xlane.f32.xlu0 %v939
    %v941 = vpop.xlane.xlu0 %940
    %v942 = vadd.f32 %v891, %v892
    %943 = vadd.xlane.f32.xlu0 %v942
    %v944 = vpop.xlane.xlu0 %943
    %v945 = vadd.f32 %v893, %v894
    %946 = vadd.xlane.f32.xlu0 %v945
    %v947 = vpop.xlane.xlu0 %946
    %v948 = vadd.f32 %v895, %v896
    %949 = vadd.xlane.f32.xlu0 %v948
    %v950 = vpop.xlane.xlu0 %949
    %v951 = vadd.f32 %v897, %v898
    %952 = vadd.xlane.f32.xlu0 %v951
    %v953 = vpop.xlane.xlu0 %952
    %v954 = vadd.f32 %v899, %v900
    %955 = vadd.xlane.f32.xlu0 %v954
    %v956 = vpop.xlane.xlu0 %955
    %v957 = vadd.f32 %v901, %v902
    %958 = vadd.xlane.f32.xlu0 %v957
    %v959 = vpop.xlane.xlu0 %958
    %v960 = vadd.f32 %v903, %v904
    %961 = vadd.xlane.f32.xlu0 %v960
    %v962 = vpop.xlane.xlu0 %961
    %v963 = vadd.f32 %v905, %v906
    %964 = vadd.xlane.f32.xlu0 %v963
    %v965 = vpop.xlane.xlu0 %964
    %v966 = vadd.f32 %v907, %v908
    %967 = vadd.xlane.f32.xlu0 %v966
    %v968 = vpop.xlane.xlu0 %967
    %v969 = vadd.f32 %v909, %v910
    %970 = vadd.xlane.f32.xlu0 %v969
    %v971 = vpop.xlane.xlu0 %970
    %v972 = vadd.f32 %v911, %v912
    %973 = vadd.xlane.f32.xlu0 %v972
    %v974 = vpop.xlane.xlu0 %973
    %v975 = vadd.f32 %v913, %v914
    %976 = vadd.xlane.f32.xlu0 %v975
    %v977 = vpop.xlane.xlu0 %976
    %v978 = vadd.f32 %v915, %v916
    %979 = vadd.xlane.f32.xlu0 %v978
    %v980 = vpop.xlane.xlu0 %979
    %v981 = vadd.f32 %v917, %v918
    %982 = vadd.xlane.f32.xlu0 %v981
    %v983 = vpop.xlane.xlu0 %982
    %v984 = vadd.f32 %v919, %v920
    %985 = vadd.xlane.f32.xlu0 %v984
    %v986 = vpop.xlane.xlu0 %985
    %v987 = vadd.f32 %v921, %v922
    %988 = vadd.xlane.f32.xlu0 %v987
    %v989 = vpop.xlane.xlu0 %988
    %v990 = vadd.f32 %v923, %v924
    %991 = vadd.xlane.f32.xlu0 %v990
    %v992 = vpop.xlane.xlu0 %991
    %v993 = vadd.f32 %v925, %v926
    %994 = vadd.xlane.f32.xlu0 %v993
    %v995 = vpop.xlane.xlu0 %994
    %v996 = vadd.f32 %v927, %v928
    %997 = vadd.xlane.f32.xlu0 %v996
    %v998 = vpop.xlane.xlu0 %997
    %v999 = vadd.f32 %v929, %v930
    %1000 = vadd.xlane.f32.xlu0 %v999
    %v1001 = vpop.xlane.xlu0 %1000
    %v1002 = vadd.f32 %v931, %v932
    %1003 = vadd.xlane.f32.xlu0 %v1002
    %v1004 = vpop.xlane.xlu0 %1003
    %v1005 = vadd.f32 %v933, %v934
    %1006 = vadd.xlane.f32.xlu0 %v1005
    %v1007 = vpop.xlane.xlu0 %1006
    %v1008 = vadd.f32 %v935, %v936
    %1009 = vadd.xlane.f32.xlu0 %v1008
    %v1010 = vpop.xlane.xlu0 %1009
    %v1011 = vadd.f32 %v937, %v938
    %1012 = vadd.xlane.f32.xlu0 %v1011
    %v1013 = vpop.xlane.xlu0 %1012
    %v1014 = vld [vmem:[#allocation2] sm:$0x1]
    %v1016 = vlaneseq
    %v1017 = vshrl.u32 %v1016, 7
    %v1018 = vsub.s32 0, %v1017
    %v1019 = vrot.slane %v1014, %v1018
    %v1021 = vadd.f32 %v941, %v1019
    %v1022 = vadd.f32 %v944, %v1019
    %v1023 = vadd.f32 %v947, %v1019
    %v1024 = vadd.f32 %v950, %v1019
    %v1025 = vadd.f32 %v953, %v1019
    %v1026 = vadd.f32 %v956, %v1019
    %v1027 = vadd.f32 %v959, %v1019
    %v1028 = vadd.f32 %v962, %v1019
    %v1029 = vadd.f32 %v965, %v1019
    %v1030 = vadd.f32 %v968, %v1019
    %v1031 = vadd.f32 %v971, %v1019
    %v1032 = vadd.f32 %v974, %v1019
    %v1033 = vadd.f32 %v977, %v1019
    %v1034 = vadd.f32 %v980, %v1019
    %v1035 = vadd.f32 %v983, %v1019
    %v1036 = vadd.f32 %v986, %v1019
    %v1037 = vadd.f32 %v989, %v1019
    %v1038 = vadd.f32 %v992, %v1019
    %v1039 = vadd.f32 %v995, %v1019
    %v1040 = vadd.f32 %v998, %v1019
    %v1041 = vadd.f32 %v1001, %v1019
    %v1042 = vadd.f32 %v1004, %v1019
    %v1043 = vadd.f32 %v1007, %v1019
    %v1044 = vadd.f32 %v1010, %v1019
    %v1045 = vadd.f32 %v1013, %v1019
    %v1046 = vmul.f32 %v1021, 0.5
    %v1047 = vmul.f32 %v1022, 0.5
    %v1048 = vmul.f32 %v1023, 0.5
    %v1049 = vmul.f32 %v1024, 0.5
    %v1050 = vmul.f32 %v1025, 0.5
    %v1051 = vmul.f32 %v1026, 0.5
    %v1052 = vmul.f32 %v1027, 0.5
    %v1053 = vmul.f32 %v1028, 0.5
    %v1054 = vmul.f32 %v1029, 0.5
    %v1055 = vmul.f32 %v1030, 0.5
    %v1056 = vmul.f32 %v1031, 0.5
    %v1057 = vmul.f32 %v1032, 0.5
    %v1058 = vmul.f32 %v1033, 0.5
    %v1059 = vmul.f32 %v1034, 0.5
    %v1060 = vmul.f32 %v1035, 0.5
    %v1061 = vmul.f32 %v1036, 0.5
    %v1062 = vmul.f32 %v1037, 0.5
    %v1063 = vmul.f32 %v1038, 0.5
    %v1064 = vmul.f32 %v1039, 0.5
    %v1065 = vmul.f32 %v1040, 0.5
    %v1066 = vmul.f32 %v1041, 0.5
    %v1067 = vmul.f32 %v1042, 0.5
    %v1068 = vmul.f32 %v1043, 0.5
    %v1069 = vmul.f32 %v1044, 0.5
    %v1070 = vmul.f32 %v1045, 0.5
    %v1071 = vtanh.pop %v1046
    %v1072 = vtanh.pop %v1047
    %v1073 = vtanh.pop %v1048
    %v1074 = vtanh.pop %v1049
    %v1075 = vtanh.pop %v1050
    %v1076 = vtanh.pop %v1051
    %v1077 = vtanh.pop %v1052
    %v1078 = vtanh.pop %v1053
    %v1079 = vtanh.pop %v1054
    %v1080 = vtanh.pop %v1055
    %v1081 = vtanh.pop %v1056
    %v1082 = vtanh.pop %v1057
    %v1083 = vtanh.pop %v1058
    %v1084 = vtanh.pop %v1059
    %v1085 = vtanh.pop %v1060
    %v1086 = vtanh.pop %v1061
    %v1087 = vtanh.pop %v1062
    %v1088 = vtanh.pop %v1063
    %v1089 = vtanh.pop %v1064
    %v1090 = vtanh.pop %v1065
    %v1091 = vtanh.pop %v1066
    %v1092 = vtanh.pop %v1067
    %v1093 = vtanh.pop %v1068
    %v1094 = vtanh.pop %v1069
    %v1095 = vtanh.pop %v1070
    %v1096 = vadd.f32 %v1071, 1.0
    %v1097 = vadd.f32 %v1072, 1.0
    %v1098 = vadd.f32 %v1073, 1.0
    %v1099 = vadd.f32 %v1074, 1.0
    %v1100 = vadd.f32 %v1075, 1.0
    %v1101 = vadd.f32 %v1076, 1.0
    %v1102 = vadd.f32 %v1077, 1.0
    %v1103 = vadd.f32 %v1078, 1.0
    %v1104 = vadd.f32 %v1079, 1.0
    %v1105 = vadd.f32 %v1080, 1.0
    %v1106 = vadd.f32 %v1081, 1.0
    %v1107 = vadd.f32 %v1082, 1.0
    %v1108 = vadd.f32 %v1083, 1.0
    %v1109 = vadd.f32 %v1084, 1.0
    %v1110 = vadd.f32 %v1085, 1.0
    %v1111 = vadd.f32 %v1086, 1.0
    %v1112 = vadd.f32 %v1087, 1.0
    %v1113 = vadd.f32 %v1088, 1.0
    %v1114 = vadd.f32 %v1089, 1.0
    %v1115 = vadd.f32 %v1090, 1.0
    %v1116 = vadd.f32 %v1091, 1.0
    %v1117 = vadd.f32 %v1092, 1.0
    %v1118 = vadd.f32 %v1093, 1.0
    %v1119 = vadd.f32 %v1094, 1.0
    %v1120 = vadd.f32 %v1095, 1.0
    %v1121 = vmul.f32 %v1096, 0.5
    %v1122 = vmul.f32 %v1097, 0.5
    %v1123 = vmul.f32 %v1098, 0.5
    %v1124 = vmul.f32 %v1099, 0.5
    %v1125 = vmul.f32 %v1100, 0.5
    %v1126 = vmul.f32 %v1101, 0.5
    %v1127 = vmul.f32 %v1102, 0.5
    %v1128 = vmul.f32 %v1103, 0.5
    %v1129 = vmul.f32 %v1104, 0.5
    %v1130 = vmul.f32 %v1105, 0.5
    %v1131 = vmul.f32 %v1106, 0.5
    %v1132 = vmul.f32 %v1107, 0.5
    %v1133 = vmul.f32 %v1108, 0.5
    %v1134 = vmul.f32 %v1109, 0.5
    %v1135 = vmul.f32 %v1110, 0.5
    %v1136 = vmul.f32 %v1111, 0.5
    %v1137 = vmul.f32 %v1112, 0.5
    %v1138 = vmul.f32 %v1113, 0.5
    %v1139 = vmul.f32 %v1114, 0.5
    %v1140 = vmul.f32 %v1115, 0.5
    %v1141 = vmul.f32 %v1116, 0.5
    %v1142 = vmul.f32 %v1117, 0.5
    %v1143 = vmul.f32 %v1118, 0.5
    %v1144 = vmul.f32 %v1119, 0.5
    %v1145 = vmul.f32 %v1120, 0.5
    %vm1146 = vcmask 7168
    %1147 = vst.msk [vmem:[%s7] sm:$0xff] %vm1146, %v1121
    %1148 = vst.msk [vmem:[%s7 + $0x8] sm:$0xff] %vm1146, %v1122
    %1149 = vst.msk [vmem:[%s7 + $0x10] sm:$0xff] %vm1146, %v1123
    %1150 = vst.msk [vmem:[%s7 + $0x18] sm:$0xff] %vm1146, %v1124
    %1151 = vst.msk [vmem:[%s7 + $0x20] sm:$0xff] %vm1146, %v1125
    %1152 = vst.msk [vmem:[%s7 + $0x28] sm:$0xff] %vm1146, %v1126
    %1153 = vst.msk [vmem:[%s7 + $0x30] sm:$0xff] %vm1146, %v1127
    %1154 = vst.msk [vmem:[%s7 + $0x38] sm:$0xff] %vm1146, %v1128
    %1155 = vst.msk [vmem:[%s7 + $0x40] sm:$0xff] %vm1146, %v1129
    %1156 = vst.msk [vmem:[%s7 + $0x48] sm:$0xff] %vm1146, %v1130
    %1157 = vst.msk [vmem:[%s7 + $0x50] sm:$0xff] %vm1146, %v1131
    %1158 = vst.msk [vmem:[%s7 + $0x58] sm:$0xff] %vm1146, %v1132
    %1159 = vst.msk [vmem:[%s7 + $0x60] sm:$0xff] %vm1146, %v1133
    %1160 = vst.msk [vmem:[%s7 + $0x68] sm:$0xff] %vm1146, %v1134
    %1161 = vst.msk [vmem:[%s7 + $0x70] sm:$0xff] %vm1146, %v1135
    %1162 = vst.msk [vmem:[%s7 + $0x78] sm:$0xff] %vm1146, %v1136
    %1163 = vst.msk [vmem:[%s7 + $0x80] sm:$0xff] %vm1146, %v1137
    %1164 = vst.msk [vmem:[%s7 + $0x88] sm:$0xff] %vm1146, %v1138
    %1165 = vst.msk [vmem:[%s7 + $0x90] sm:$0xff] %vm1146, %v1139
    %1166 = vst.msk [vmem:[%s7 + $0x98] sm:$0xff] %vm1146, %v1140
    %1167 = vst.msk [vmem:[%s7 + $0xa0] sm:$0xff] %vm1146, %v1141
    %1168 = vst.msk [vmem:[%s7 + $0xa8] sm:$0xff] %vm1146, %v1142
    %1169 = vst.msk [vmem:[%s7 + $0xb0] sm:$0xff] %vm1146, %v1143
    %1170 = vst.msk [vmem:[%s7 + $0xb8] sm:$0xff] %vm1146, %v1144
    %1171 = vst.msk [vmem:[%s7 + $0xc0] sm:$0xff] %vm1146, %v1145
    // Predicated region
    $region34: #{tpu_custom_call.1} parent=1 // pred_check
      _
    $region35: #{tpu_custom_call.1} parent=1 // pred_check_branch
      %1173 = sbr.rel (0) target = $region37
    $region36: #{tpu_custom_call.1} parent=1 // pred_region
      _
    $region37: #{tpu_custom_call.1} parent=1 // pred_fallthru
      _
    // Predicated region
    $region38: #{tpu_custom_call.1} parent=1 // pred_check
      _
    $region39: #{tpu_custom_call.1} parent=1 // pred_check_branch
      %1175 = sbr.rel (0) target = $region41
    $region40: #{tpu_custom_call.1} parent=1 // pred_region
      _
    $region41: #{tpu_custom_call.1} parent=1 // pred_fallthru
      _
    %1176 = vsyncpa [#allocation4], 1

</llo_original>
